<compile_context>
chip_gen: v6e
topology: v6e:2x2x1
jax: 0.10.0
libtpu: 0.0.40
codegen_flags: <defaults>
</compile_context>

<pallas_src>
import functools

import jax
import jax.numpy as jnp
from jax.experimental import pallas as pl
from jax.experimental.pallas import tpu as pltpu


def _round_up(n: int, m: int) -> int:
    return ((n + m - 1) // m) * m


def _decoder_eval_kernel(x_ref, w_ref, b_ref, o_ref):
    # Native-dtype inputs straight to the MXU; f32 accumulation.
    logits = jnp.dot(x_ref[...], w_ref[...], preferred_element_type=jnp.float32)
    logits = logits + b_ref[...]
    o_ref[...] = jax.nn.sigmoid(logits).astype(o_ref.dtype)


def _decoder_train_kernel(x_ref, bits_ref, w_ref, b_ref, o_ref, *, threshold, scale):
    # Inverted dropout: integer compare + single select + one multiply.
    keep_scale = jnp.where(
        bits_ref[...] >= jnp.uint32(threshold),
        jnp.float32(scale),
        jnp.float32(0.0),
    )
    x = x_ref[...] * keep_scale.astype(x_ref.dtype)
    logits = jnp.dot(x, w_ref[...], preferred_element_type=jnp.float32)
    logits = logits + b_ref[...]
    o_ref[...] = jax.nn.sigmoid(logits).astype(o_ref.dtype)


@functools.partial(jax.jit, static_argnames=("dropout_p", "training"))
def decoder_forward(x, w, b, rng_key=None, *, dropout_p=0.5, training=False):
    """Decoder forward pass: sigmoid(fc(dropout(x))).

    x: [B, D]; w: [C, D] (torch fc.weight layout); b: [C].
    Returns [B, C] in x.dtype.
    """
    B, D = x.shape
    C = w.shape[0]

    # ---- lane/sublane-friendly padded shapes & tile sizes -----------------
    C_pad = _round_up(C, 128)
    tn = min(C_pad, 512)
    C_pad = _round_up(C_pad, tn)

    B8 = _round_up(B, 8)
    tm = min(B8, 256)
    B_pad = _round_up(B8, tm)

    # Pre-transpose + zero-pad weight/bias to a lane-dense [D, C_pad] slab.
    w_t = jnp.zeros((D, C_pad), dtype=w.dtype).at[:, :C].set(w.T)
    b2 = jnp.zeros((1, C_pad), dtype=jnp.float32).at[0, :C].set(
        b.astype(jnp.float32)
    )

    x_p = x
    if B_pad != B:
        x_p = jnp.zeros((B_pad, D), dtype=x.dtype).at[:B].set(x)

    grid = (B_pad // tm, C_pad // tn)
    out_shape = jax.ShapeDtypeStruct((B_pad, C_pad), x.dtype)

    x_spec = pl.BlockSpec((tm, D), lambda i, j: (i, 0))
    w_spec = pl.BlockSpec((D, tn), lambda i, j: (0, j))
    b_spec = pl.BlockSpec((1, tn), lambda i, j: (0, j))
    o_spec = pl.BlockSpec((tm, tn), lambda i, j: (i, j))

    cparams = pltpu.CompilerParams(
        dimension_semantics=("parallel", "parallel"),
    )

    if training and dropout_p > 0.0:
        if dropout_p >= 1.0:
            # TODO(synk): torch allows p=1.0 (all-zero output); not supported here.
            raise ValueError("dropout_p must be < 1.0 for the training path")
        if rng_key is None:
            raise ValueError("training=True with dropout_p > 0 requires rng_key")

        # Portable random bits (works on real TPU and interpret mode); the
        # dropout mask/scale itself is fused in the kernel.
        bits = jax.random.bits(rng_key, (B, D), dtype=jnp.uint32)
        if B_pad != B:
            bits = jnp.zeros((B_pad, D), dtype=jnp.uint32).at[:B].set(bits)

        threshold = min(int(round(dropout_p * (1 << 32))), (1 << 32) - 1)
        scale = 1.0 / (1.0 - dropout_p)
        kernel = functools.partial(
            _decoder_train_kernel, threshold=threshold, scale=scale
        )
        bits_spec = pl.BlockSpec((tm, D), lambda i, j: (i, 0))

        y = pl.pallas_call(
            kernel,
            out_shape=out_shape,
            grid=grid,
            in_specs=[x_spec, bits_spec, w_spec, b_spec],
            out_specs=o_spec,
            compiler_params=cparams,
        )(x_p, bits, w_t, b2)
    else:
        # Eval mode: dropout is the identity (matches nn.Dropout.eval()).
        y = pl.pallas_call(
            _decoder_eval_kernel,
            out_shape=out_shape,
            grid=grid,
            in_specs=[x_spec, w_spec, b_spec],
            out_specs=o_spec,
            compiler_params=cparams,
        )(x_p, w_t, b2)

    return y[:B, :C]


def init_decoder_params(key, input_size, num_classes):
    """Xavier-uniform weight (nn.init.xavier_uniform_), zero bias."""
    bound = (6.0 / (input_size + num_classes)) ** 0.5
    w = jax.random.uniform(
        key, (num_classes, input_size), dtype=jnp.float32, minval=-bound, maxval=bound
    )
    b = jnp.zeros((num_classes,), dtype=jnp.float32)
    return w, b


if __name__ == "__main__":
    input_size = 32
    num_classes = 16
    batch = 8
    dropout_p = 0.5

    key = jax.random.PRNGKey(0)
    kx, kw, kd = jax.random.split(key, 3)

    x = jax.random.normal(kx, (batch, input_size), dtype=jnp.float32)
    w, b = init_decoder_params(kw, input_size, num_classes)

    # ---- eval path (dropout = identity), matches PyTorch .eval() ----------
    y_eval = jax.block_until_ready(
        decoder_forward(x, w, b, training=False, dropout_p=dropout_p)
    )
    y_eval_ref = jax.nn.sigmoid(x @ w.T + b)
    assert y_eval.shape == (batch, num_classes)
    assert jnp.allclose(y_eval, y_eval_ref, atol=2e-3, rtol=2e-3), "eval mismatch"

    # ---- training path (inverted dropout fused in-kernel) -----------------
    y_train = jax.block_until_ready(
        decoder_forward(x, w, b, kd, training=True, dropout_p=dropout_p)
    )
    threshold = min(int(round(dropout_p * (1 << 32))), (1 << 32) - 1)
    bits = jax.random.bits(kd, (batch, input_size), dtype=jnp.uint32)
    keep = (bits >= jnp.uint32(threshold)).astype(jnp.float32) / (1.0 - dropout_p)
    y_train_ref = jax.nn.sigmoid((x * keep) @ w.T + b)
    assert y_train.shape == (batch, num_classes)
    assert jnp.allclose(y_train, y_train_ref, atol=2e-3, rtol=2e-3), "train mismatch"

    print("KERNEL_OK")
</pallas_src>

<mosaic_0001>
module attributes {stable_mosaic.version = 11 : i64} {
  func.func @_decoder_eval_kernel(%arg0: i32, %arg1: i32, %arg2: memref<8x32xf32, #tpu.memory_space<vmem>>, %arg3: memref<32x128xf32, #tpu.memory_space<vmem>>, %arg4: memref<1x128xf32, #tpu.memory_space<vmem>>, %arg5: memref<8x128xf32, #tpu.memory_space<vmem>>) attributes {dimension_semantics = [#tpu.dimension_semantics<parallel>, #tpu.dimension_semantics<parallel>], iteration_bounds = array<i64: 1, 1>, scalar_prefetch = 0 : i64, scratch_operands = 0 : i64, tpu.core_type = #tpu.core_type<tc>, window_params = [{transform_indices = @transform_0, window_bounds = array<i64: 8, 32>}, {transform_indices = @transform_1, window_bounds = array<i64: 32, 128>}, {transform_indices = @transform_2, window_bounds = array<i64: 1, 128>}, {transform_indices = @transform_3, window_bounds = array<i64: 8, 128>}]} {
    %c0 = arith.constant 0 : index
    %c0_0 = arith.constant 0 : index
    %0 = vector.load %arg2[%c0, %c0_0] : memref<8x32xf32, #tpu.memory_space<vmem>>, vector<8x32xf32>
    %c0_1 = arith.constant 0 : index
    %c0_2 = arith.constant 0 : index
    %1 = vector.load %arg3[%c0_1, %c0_2] : memref<32x128xf32, #tpu.memory_space<vmem>>, vector<32x128xf32>
    %cst = arith.constant dense<0.000000e+00> : vector<8x128xf32>
    %2 = tpu.matmul %0, %1, %cst {dimension_numbers = #tpu.dot_dimension_numbers<[1], [0], [0], [1], [0, 0, 1, 1], [], []>} : vector<8x32xf32>, vector<32x128xf32>, vector<8x128xf32> -> vector<8x128xf32>
    %c0_3 = arith.constant 0 : index
    %c0_4 = arith.constant 0 : index
    %3 = vector.load %arg4[%c0_3, %c0_4] : memref<1x128xf32, #tpu.memory_space<vmem>>, vector<1x128xf32>
    %4 = vector.broadcast %3 : vector<1x128xf32> to vector<8x128xf32>
    %5 = arith.addf %2, %4 : vector<8x128xf32>
    %6 = arith.negf %5 : vector<8x128xf32>
    %7 = math.exp %6 : vector<8x128xf32>
    %cst_5 = arith.constant 1.000000e+00 : f32
    %8 = vector.broadcast %cst_5 : f32 to vector<8x128xf32>
    %9 = arith.addf %8, %7 : vector<8x128xf32>
    %10 = arith.divf %8, %9 : vector<8x128xf32>
    %c0_6 = arith.constant 0 : index
    %c0_7 = arith.constant 0 : index
    %11 = vector.load %arg5[%c0_6, %c0_7] : memref<8x128xf32, #tpu.memory_space<vmem>>, vector<8x128xf32>
    tpu.vector_store %arg5[%c0_6, %c0_7], %10 {strides = array<i32>} : memref<8x128xf32, #tpu.memory_space<vmem>>, vector<8x128xf32>,
    return
  }
  func.func @transform_0(%arg0: i32, %arg1: i32) -> (i32, i32) {
    %c0_i32 = arith.constant 0 : i32
    %c0_i32_0 = arith.constant 0 : i32
    return %arg0, %c0_i32 : i32, i32
  }
  func.func @transform_1(%arg0: i32, %arg1: i32) -> (i32, i32) {
    %c0_i32 = arith.constant 0 : i32
    %c0_i32_0 = arith.constant 0 : i32
    return %c0_i32, %arg1 : i32, i32
  }
  func.func @transform_2(%arg0: i32, %arg1: i32) -> (i32, i32) {
    %c0_i32 = arith.constant 0 : i32
    %c0_i32_0 = arith.constant 0 : i32
    return %c0_i32, %arg1 : i32, i32
  }
  func.func @transform_3(%arg0: i32, %arg1: i32) -> (i32, i32) {
    %c0_i32 = arith.constant 0 : i32
    return %arg0, %arg1 : i32, i32
  }
}

</mosaic_0001>

<llo_original>
// kernel: decoder_forward.1
$region0: #{decoder_forward.1}
  #allocation0 [shape = 'u32[]', space=smem, size = 0x4, offset = 0x4, fixed_abs, tag = 'smem constant byte address 0x4 - core index']
  #allocation1 [shape = 'u32[144,128]{1,0:T(1,128)}', space=vmem, size = 0x12000, scoped, tag = 'internal scratch']
  %s0 = inlined_call_operand.vmem [shape: f32[8,32], index: 0, kind: input, shape index: {}]
  %s1 = inlined_call_operand.vmem [shape: f32[32,128], index: 1, kind: input, shape index: {}]
  %s2 = inlined_call_operand.vmem [shape: f32[1,128], index: 2, kind: input, shape index: {}]
  %s3 = inlined_call_operand.hbm [shape: f32[8,128], index: 3, kind: output, shape index: {}]
  %s4 = sld [smem:[#allocation0]]
  $region22: #{decoder_forward.1} parent=0
    _
  %s6 = ssub.s32 1, %s4
  %s7 = scalar_select 0, %s6, %s4
  $region1: #{decoder_forward.1} parent=0
    #allocation2 [shape = 'u8[4096]{0}', space=vmem, size = 0x1000, scoped, tag = 'output window, operand 0, single buffered']
    #allocation3 [shape = 's32[1]{0}', space=sflag, size = 0x4, scoped, tag = 'scoped memory for decoder_forward.1']
    %8 = vsyncpa [#allocation3], 0
    // Predicated region
    $region2: #{decoder_forward.1} parent=1 // pred_check
      _
    $region3: #{decoder_forward.1} parent=1 // pred_check_branch
      %10 = sbr.rel (0) target = $region5
    $region4: #{decoder_forward.1} parent=1 // pred_region
      _
    $region5: #{decoder_forward.1} parent=1 // pred_fallthru
      _
    // Predicated region
    $region6: #{decoder_forward.1} parent=1 // pred_check
      _
    $region7: #{decoder_forward.1} parent=1 // pred_check_branch
      %12 = sbr.rel (0) target = $region9
    $region8: #{decoder_forward.1} parent=1 // pred_region
      _
    $region9: #{decoder_forward.1} parent=1 // pred_fallthru
      _
    // Predicated region
    $region10: #{decoder_forward.1} parent=1 // pred_check
      _
    $region11: #{decoder_forward.1} parent=1 // pred_check_branch
      %14 = sbr.rel (0) target = $region13
    $region12: #{decoder_forward.1} parent=1 // pred_region
      _
    $region13: #{decoder_forward.1} parent=1 // pred_fallthru
      _
    %v15 = vld [vmem:[%s0] sm:$0xff]
    %v16 = vld [vmem:[%s1] sm:$0xff]
    %v17 = vld [vmem:[%s1 + $0x8] sm:$0xff]
    %v18 = vld [vmem:[%s1 + $0x10] sm:$0xff]
    %v19 = vld [vmem:[%s1 + $0x18] sm:$0xff]
    %v20 = vld [vmem:[%s2] sm:$0x1]
    %v22 = vlaneseq
    %v23 = vshrl.u32 %v22, 7
    %v24 = vsub.s32 0, %v23
    %v25 = vrot.slane %v20, %v24
    %vm27 = vcmask 261120
    %v29 = vsel %vm27, %v15, 0
    %31 = vmatprep.subr.mxu0 0.0
    %32 = vmatpush1.msra.mxu0 0.0
    %33 = vmatprep.subr.mxu0 0.0
    %34 = vmatpush1.msra.mxu0 0.0
    %35 = vmatprep.subr.mxu0 0.0
    %36 = vmatpush1.msra.mxu0 0.0
    %37 = vmatprep.subr.mxu0 0.0
    %38 = vmatpush1.msra.mxu0 0.0
    %39 = vmatprep.subr.mxu0 0.0
    %40 = vmatpush1.msra.mxu0 0.0
    %41 = vmatprep.subr.mxu0 0.0
    %42 = vmatpush1.msra.mxu0 0.0
    %43 = vmatprep.subr.mxu0 0.0
    %44 = vmatpush1.msra.mxu0 0.0
    %45 = vmatprep.subr.mxu0 0.0
    %46 = vmatpush1.msra.mxu0 0.0
    %47 = vmatprep.subr.mxu0 0.0
    %48 = vmatpush1.msra.mxu0 0.0
    %49 = vmatprep.subr.mxu0 0.0
    %50 = vmatpush1.msra.mxu0 0.0
    %51 = vmatprep.subr.mxu0 0.0
    %52 = vmatpush1.msra.mxu0 0.0
    %53 = vmatprep.subr.mxu0 0.0
    %54 = vmatpush1.msra.mxu0 0.0
    %55 = vmatprep.subr.mxu0 0.0
    %56 = vmatpush1.msra.mxu0 %v19
    %57 = vmatprep.subr.mxu0 0.0
    %58 = vmatpush1.msra.mxu0 %v18
    %59 = vmatprep.subr.mxu0 0.0
    %60 = vmatpush1.msra.mxu0 %v17
    %61 = vmatprep.subr.mxu0 0.0
    %62 = vmatpush1.msra.mxu0 %v16
    %63 = vmatprep.subr.mxu0 0.0
    %64 = vmatpush2.msra.mxu0 0.0
    %65 = vmatprep.subr.mxu0 0.0
    %66 = vmatpush2.msra.mxu0 0.0
    %67 = vmatprep.subr.mxu0 0.0
    %68 = vmatpush2.msra.mxu0 0.0
    %69 = vmatprep.subr.mxu0 0.0
    %70 = vmatpush2.msra.mxu0 0.0
    %71 = vmatprep.subr.mxu0 0.0
    %72 = vmatpush2.msra.mxu0 0.0
    %73 = vmatprep.subr.mxu0 0.0
    %74 = vmatpush2.msra.mxu0 0.0
    %75 = vmatprep.subr.mxu0 0.0
    %76 = vmatpush2.msra.mxu0 0.0
    %77 = vmatprep.subr.mxu0 0.0
    %78 = vmatpush2.msra.mxu0 0.0
    %79 = vmatprep.subr.mxu0 0.0
    %80 = vmatpush2.msra.mxu0 0.0
    %81 = vmatprep.subr.mxu0 0.0
    %82 = vmatpush2.msra.mxu0 0.0
    %83 = vmatprep.subr.mxu0 0.0
    %84 = vmatpush2.msra.mxu0 0.0
    %85 = vmatprep.subr.mxu0 0.0
    %86 = vmatpush2.msra.mxu0 0.0
    %87 = vmatprep.subr.mxu0 0.0
    %88 = vmatpush2.msra.mxu0 0.0
    %89 = vmatprep.subr.mxu0 0.0
    %90 = vmatpush2.msra.mxu0 0.0
    %91 = vmatprep.subr.mxu0 0.0
    %92 = vmatpush2.msra.mxu0 0.0
    %93 = vmatprep.subr.mxu0 0.0
    %94 = vmatpush2.msra.mxu0 0.0
    %95 = vmatprep.mubr.f32.mxu0 0.0
    %96 = vmatmul.mubr.f32.gmra.mxu0 %v29
    %v97 = vpop.f32.mrf.mxu0
    %v98 = vadd.f32 %v25, %v97
    %v99 = vpop.f32.mrf.mxu0
    %100 = vdwg.mxu0
    %v101 = vxor.u32 %v98, 2147483648
    %v102 = vmul.f32 %v101, 1.442695
    %v103 = vpow.pop %v102
    %v104 = vadd.f32 %v103, 1.0
    %v105 = vrcp.pop %v104
    %v106 = vmul.f32 1.0, %v105
    %107 = vst [vmem:[#allocation2] sm:$0xff] %v106
    // Predicated region
    $region14: #{decoder_forward.1} parent=1 // pred_check
      _
    $region15: #{decoder_forward.1} parent=1 // pred_check_branch
      %109 = sbr.rel (0) target = $region17
    $region16: #{decoder_forward.1} parent=1 // pred_region
      %s111 = ssub.s32 128, 128
      %112 = vsyncadd [#allocation3], %s111
      %s114 = sshll.u32 [#allocation2], 4
      %s115 = int_to_ptr.vmem [resolvable:$true] %s114
      %117 = dma.vmem_to_hbm [thread:$0]  %s115, 128, %s3, [#allocation3]
    $region17: #{decoder_forward.1} parent=1 // pred_fallthru
      _
    // Predicated region
    $region18: #{decoder_forward.1} parent=1 // pred_check
      _
    $region19: #{decoder_forward.1} parent=1 // pred_check_branch
      %119 = sbr.rel (0) target = $region21
    $region20: #{decoder_forward.1} parent=1 // pred_region
      %120 = dma.done [#allocation3], 128
    $region21: #{decoder_forward.1} parent=1 // pred_fallthru
      _
    %121 = vsyncpa [#allocation3], 1

</llo_original>
